<compile_context>
chip_gen: v7x
topology: tpu7x:2x2x1
jax: 0.10.0
libtpu: 0.0.40
codegen_flags: <defaults>
</compile_context>

<pallas_src>
import functools

import jax
import jax.numpy as jnp
from jax.experimental import pallas as pl
from jax.experimental.pallas import tpu as pltpu

LANE = 128


def _mlp_fused_kernel(*refs, num_layers):
    """refs = (x_ref, w1_ref, ..., wL_ref, o_ref). Full MLP on one batch tile."""
    x_ref = refs[0]
    w_refs = refs[1:1 + num_layers]
    o_ref = refs[1 + num_layers]

    # Cast at the VMEM boundary (in-kernel) -- no wrapper-side HBM cast pass.
    h = x_ref[...].astype(w_refs[0].dtype)
    for i, w_ref in enumerate(w_refs):
        # bf16 (or f32) operands on the MXU, f32 accumulation.
        h = jnp.dot(h, w_ref[...], preferred_element_type=jnp.float32)
        if i != num_layers - 1:
            # ReLU in f32 (v5e VPU has no bf16), then cast back for the next MXU pass.
            h = jnp.maximum(h, 0.0).astype(w_refs[i + 1].dtype)
    o_ref[...] = h.astype(o_ref.dtype)


def init_mlp_params(sizes, key, dtype=jnp.float32):
    """One (out, in) weight per layer, nn.Linear default init range, bias=False."""
    params = []
    for i in range(len(sizes) - 1):
        key, sub = jax.random.split(key)
        bound = 1.0 / (sizes[i] ** 0.5)
        w = jax.random.uniform(
            sub, (sizes[i + 1], sizes[i]), dtype=dtype, minval=-bound, maxval=bound
        )
        params.append(w)
    return params


def prepare_params(params, compute_dtype=jnp.bfloat16, pad_hidden=True):
    """One-time (NOT per-forward) prep:
      * transpose (out, in) -> (in, out) and cast to the compute dtype,
      * zero-pad every HIDDEN width up to a multiple of 128 (layer i's output
        dim together with layer i+1's input dim) so ReLU/casts and the next
        dot's LHS run on lane-dense vregs.  Zero padding keeps the math exact.
    The true input width and the final output width are left untouched."""
    n = len(params)
    w_ts = []
    prev_pad = 0
    for i, w in enumerate(params):
        w_t = jnp.transpose(w).astype(compute_dtype)          # (in, out)
        if prev_pad:
            # Extra input rows correspond to the previous layer's zero columns.
            w_t = jnp.pad(w_t, ((0, prev_pad), (0, 0)))
        if pad_hidden and i != n - 1:
            out_pad = (-w_t.shape[1]) % LANE
            if out_pad:
                w_t = jnp.pad(w_t, ((0, 0), (0, out_pad)))
            prev_pad = out_pad
        else:
            prev_pad = 0
        w_ts.append(w_t)
    return w_ts


def _pick_block_m(M):
    """Large tiles amortize the ~0.35us/grid-step overhead; but keep >= 2 grid
    steps whenever possible so the "parallel" axis can shard batch tiles
    across v7x's two TensorCores."""
    if M <= 8:
        return M
    for tm in (2048, 1024, 512, 256, 128, 64, 32, 16, 8):
        if 2 * tm <= M:
            return tm
    return 8


def mlp_forward_pallas(x, w_ts, *, out_dtype=None, block_m=None):
    """Fused MLP forward. x: (M, sizes[0]) in any float dtype; w_ts from
    prepare_params (compute dtype + lane-dense hidden widths)."""
    M, K0 = x.shape
    assert K0 == w_ts[0].shape[0]
    num_layers = len(w_ts)
    n_out = w_ts[-1].shape[1]                 # true output width (not padded)
    out_dtype = x.dtype if out_dtype is None else out_dtype

    tm = _pick_block_m(M) if block_m is None else block_m
    tm = min(tm, M)
    grid_m = pl.cdiv(M, tm)                   # remainder tile handled by Pallas masking
                                              # (rows are independent, so this is exact)

    kernel = functools.partial(_mlp_fused_kernel, num_layers=num_layers)

    in_specs = [pl.BlockSpec((tm, K0), lambda i: (i, 0))]
    # Weights: full-array blocks, same block index every grid step -> stay
    # resident in VMEM (no re-DMA across batch tiles).
    in_specs += [pl.BlockSpec(w.shape, lambda i: (0, 0)) for w in w_ts]

    # Narrow (true-width) output: masked vst, but ~8x fewer HBM write bytes
    # than a 128-lane padded slab and no follow-up slice kernel.
    out_spec = pl.BlockSpec((tm, n_out), lambda i: (i, 0))

    # Estimated VMEM footprint: double-buffered x/out tiles + double-buffered
    # resident weights.  Only raise the scoped limit when the v5e default
    # (16 MiB) would be tight; otherwise leave it alone.
    bytes_x = 2 * tm * K0 * x.dtype.itemsize
    bytes_o = 2 * tm * n_out * jnp.dtype(out_dtype).itemsize
    bytes_w = 2 * sum(int(w.size) * w.dtype.itemsize for w in w_ts)
    vmem_est = bytes_x + bytes_o + bytes_w
    cp_kwargs = dict(dimension_semantics=("parallel",))
    if vmem_est > 12 * 1024 * 1024:
        cp_kwargs["vmem_limit_bytes"] = min(2 * vmem_est, 100 * 1024 * 1024)

    return pl.pallas_call(
        kernel,
        out_shape=jax.ShapeDtypeStruct((M, n_out), out_dtype),
        grid_spec=pltpu.PrefetchScalarGridSpec(
            num_scalar_prefetch=0,
            grid=(grid_m,),
            in_specs=in_specs,
            out_specs=out_spec,
        ),
        compiler_params=pltpu.CompilerParams(**cp_kwargs),
    )(x, *w_ts)


def mlp_reference_f32(x, params):
    """Original PyTorch-module semantics in f32."""
    n = len(params)
    h = x
    for i, w in enumerate(params):
        h = h @ w.T
        if i != n - 1:
            h = jnp.maximum(h, 0.0)
    return h


def mlp_reference_matched(x, params, compute_dtype):
    """Mirror of the kernel math (compute-dtype operands, f32 accumulation)."""
    n = len(params)
    h = x.astype(compute_dtype)
    for i, w in enumerate(params):
        h = jnp.dot(h, jnp.transpose(w).astype(compute_dtype),
                    preferred_element_type=jnp.float32)
        if i != n - 1:
            h = jnp.maximum(h, 0.0).astype(compute_dtype)
    return h.astype(x.dtype)


if __name__ == "__main__":
    key = jax.random.PRNGKey(0)
    sizes = [32, 64, 48, 16]      # MLP([32, 64, 48, 16], bias=False)
    batch = 8

    kx, kp = jax.random.split(key)
    x = jax.random.normal(kx, (batch, sizes[0]), dtype=jnp.float32)
    params = init_mlp_params(sizes, kp)

    # --- default path: bf16 operands on the MXU, f32 accumulation ---
    w_ts_bf16 = prepare_params(params, compute_dtype=jnp.bfloat16)
    out = jax.block_until_ready(mlp_forward_pallas(x, w_ts_bf16))
    assert out.shape == (batch, sizes[-1])
    assert out.dtype == x.dtype

    ref_matched = mlp_reference_matched(x, params, jnp.bfloat16)
    assert jnp.allclose(out, ref_matched, atol=2e-3, rtol=2e-3)

    ref_f32 = mlp_reference_f32(x, params)
    assert jnp.allclose(out, ref_f32, atol=5e-2, rtol=5e-2)

    # --- f32 path: exact match to the original module's semantics ---
    w_ts_f32 = prepare_params(params, compute_dtype=jnp.float32)
    out_f32 = jax.block_until_ready(mlp_forward_pallas(x, w_ts_f32))
    assert out_f32.shape == (batch, sizes[-1])
    assert jnp.allclose(out_f32, ref_f32, atol=1e-5, rtol=1e-5)

    # --- multi-tile grid + remainder tile (exercises cdiv grid & masking) ---
    batch2 = 40                   # tm=16 -> grid of 3 steps, last one partial
    x2 = jax.random.normal(jax.random.PRNGKey(1), (batch2, sizes[0]), dtype=jnp.float32)
    out2 = jax.block_until_ready(mlp_forward_pallas(x2, w_ts_bf16))
    assert out2.shape == (batch2, sizes[-1])
    ref2 = mlp_reference_matched(x2, params, jnp.bfloat16)
    assert jnp.allclose(out2, ref2, atol=2e-3, rtol=2e-3)

    print("KERNEL_OK")
</pallas_src>

<mosaic_0001>
module attributes {stable_mosaic.version = 11 : i64} {
  func.func @_mlp_fused_kernel(%arg0: i32, %arg1: memref<8x32xf32, #tpu.memory_space<vmem>>, %arg2: memref<32x128xbf16, #tpu.memory_space<vmem>>, %arg3: memref<128x128xbf16, #tpu.memory_space<vmem>>, %arg4: memref<128x16xbf16, #tpu.memory_space<vmem>>, %arg5: memref<8x16xf32, #tpu.memory_space<vmem>>) attributes {dimension_semantics = [#tpu.dimension_semantics<parallel>], iteration_bounds = array<i64: 1>, scalar_prefetch = 0 : i64, scratch_operands = 0 : i64, tpu.core_type = #tpu.core_type<tc>, window_params = [{transform_indices = @transform_0, window_bounds = array<i64: 8, 32>}, {pipeline_mode = #tpu.pipeline_mode<synchronous>, transform_indices = @transform_1, window_bounds = array<i64: 32, 128>}, {pipeline_mode = #tpu.pipeline_mode<synchronous>, transform_indices = @transform_2, window_bounds = array<i64: 128, 128>}, {pipeline_mode = #tpu.pipeline_mode<synchronous>, transform_indices = @transform_3, window_bounds = array<i64: 128, 16>}, {transform_indices = @transform_4, window_bounds = array<i64: 8, 16>}]} {
    %c0 = arith.constant 0 : index
    %c0_0 = arith.constant 0 : index
    %0 = vector.load %arg1[%c0, %c0_0] : memref<8x32xf32, #tpu.memory_space<vmem>>, vector<8x32xf32>
    %1 = arith.truncf %0 : vector<8x32xf32> to vector<8x32xbf16>
    %c0_1 = arith.constant 0 : index
    %c0_2 = arith.constant 0 : index
    %2 = vector.load %arg2[%c0_1, %c0_2] : memref<32x128xbf16, #tpu.memory_space<vmem>>, vector<32x128xbf16>
    %cst = arith.constant dense<0.000000e+00> : vector<8x128xf32>
    %3 = tpu.matmul %1, %2, %cst {dimension_numbers = #tpu.dot_dimension_numbers<[1], [0], [0], [1], [0, 0, 1, 1], [], []>} : vector<8x32xbf16>, vector<32x128xbf16>, vector<8x128xf32> -> vector<8x128xf32>
    %cst_3 = arith.constant 0.000000e+00 : f32
    %4 = vector.broadcast %cst_3 : f32 to vector<8x128xf32>
    %5 = arith.maximumf %3, %4 : vector<8x128xf32>
    %6 = arith.truncf %5 : vector<8x128xf32> to vector<8x128xbf16>
    %c0_4 = arith.constant 0 : index
    %c0_5 = arith.constant 0 : index
    %7 = vector.load %arg3[%c0_4, %c0_5] : memref<128x128xbf16, #tpu.memory_space<vmem>>, vector<128x128xbf16>
    %cst_6 = arith.constant dense<0.000000e+00> : vector<8x128xf32>
    %8 = tpu.matmul %6, %7, %cst_6 {dimension_numbers = #tpu.dot_dimension_numbers<[1], [0], [0], [1], [0, 0, 1, 1], [], []>} : vector<8x128xbf16>, vector<128x128xbf16>, vector<8x128xf32> -> vector<8x128xf32>
    %cst_7 = arith.constant 0.000000e+00 : f32
    %9 = vector.broadcast %cst_7 : f32 to vector<8x128xf32>
    %10 = arith.maximumf %8, %9 : vector<8x128xf32>
    %11 = arith.truncf %10 : vector<8x128xf32> to vector<8x128xbf16>
    %c0_8 = arith.constant 0 : index
    %c0_9 = arith.constant 0 : index
    %12 = vector.load %arg4[%c0_8, %c0_9] : memref<128x16xbf16, #tpu.memory_space<vmem>>, vector<128x16xbf16>
    %cst_10 = arith.constant dense<0.000000e+00> : vector<8x16xf32>
    %13 = tpu.matmul %11, %12, %cst_10 {dimension_numbers = #tpu.dot_dimension_numbers<[1], [0], [0], [1], [0, 0, 1, 1], [], []>} : vector<8x128xbf16>, vector<128x16xbf16>, vector<8x16xf32> -> vector<8x16xf32>
    %c0_11 = arith.constant 0 : index
    %c0_12 = arith.constant 0 : index
    %14 = vector.load %arg5[%c0_11, %c0_12] : memref<8x16xf32, #tpu.memory_space<vmem>>, vector<8x16xf32>
    tpu.vector_store %arg5[%c0_11, %c0_12], %13 {strides = array<i32>} : memref<8x16xf32, #tpu.memory_space<vmem>>, vector<8x16xf32>,
    return
  }
  func.func @transform_0(%arg0: i32) -> (i32, i32) {
    %c0_i32 = arith.constant 0 : i32
    %c0_i32_0 = arith.constant 0 : i32
    return %arg0, %c0_i32 : i32, i32
  }
  func.func @transform_1(%arg0: i32) -> (i32, i32) {
    %c0_i32 = arith.constant 0 : i32
    %c0_i32_0 = arith.constant 0 : i32
    %c0_i32_1 = arith.constant 0 : i32
    return %c0_i32, %c0_i32_0 : i32, i32
  }
  func.func @transform_2(%arg0: i32) -> (i32, i32) {
    %c0_i32 = arith.constant 0 : i32
    %c0_i32_0 = arith.constant 0 : i32
    %c0_i32_1 = arith.constant 0 : i32
    return %c0_i32, %c0_i32_0 : i32, i32
  }
  func.func @transform_3(%arg0: i32) -> (i32, i32) {
    %c0_i32 = arith.constant 0 : i32
    %c0_i32_0 = arith.constant 0 : i32
    %c0_i32_1 = arith.constant 0 : i32
    return %c0_i32, %c0_i32_0 : i32, i32
  }
  func.func @transform_4(%arg0: i32) -> (i32, i32) {
    %c0_i32 = arith.constant 0 : i32
    %c0_i32_0 = arith.constant 0 : i32
    return %arg0, %c0_i32 : i32, i32
  }
}

</mosaic_0001>

<llo_original>
// kernel: tpu_custom_call.1
$region0: #{tpu_custom_call.1}
  #allocation0 [shape = 'u32[]', space=smem, size = 0x4, offset = 0x4, fixed_abs, tag = 'smem constant byte address 0x4 - core index']
  #allocation1 [shape = 'u32[144,128]{1,0:T(1,128)}', space=vmem, size = 0x12000, scoped, tag = 'internal scratch']
  %s0 = inlined_call_operand.vmem [shape: f32[8,32], index: 0, kind: input, shape index: {}]
  %s1 = inlined_call_operand.hbm [shape: bf16[32,128], index: 1, kind: input, shape index: {}]
  %s2 = inlined_call_operand.vmem [shape: bf16[128,128], index: 2, kind: input, shape index: {}]
  %s3 = inlined_call_operand.vmem [shape: bf16[128,16], index: 3, kind: input, shape index: {}]
  %s4 = inlined_call_operand.hbm [shape: f32[8,16], index: 4, kind: output, shape index: {}]
  %s5 = sld [smem:[#allocation0]]
  $region30: #{tpu_custom_call.1} parent=0
    _
  %s7 = ssub.s32 1, %s5
  %s8 = scalar_select 0, %s7, %s5
  $region1: #{tpu_custom_call.1} parent=0
    #allocation2 [shape = 'u8[8192]{0}', space=vmem, size = 0x2000, scoped, tag = 'input window, operand 1, single buffered']
    #allocation3 [shape = 's32[1]{0}', space=sflag, size = 0x4, scoped, tag = 'scoped memory for tpu_custom_call.1']
    #allocation4 [shape = 's32[1]{0}', space=sflag, size = 0x4, scoped, tag = 'scoped memory for tpu_custom_call.1']
    #allocation5 [shape = 'u8[4096]{0}', space=vmem, size = 0x1000, scoped, tag = 'output window, operand 0, single buffered']
    %9 = vsyncpa [#allocation3], 0
    %10 = vsyncpa [#allocation4], 0
    // Predicated region
    $region2: #{tpu_custom_call.1} parent=1 // pred_check
      _
    $region3: #{tpu_custom_call.1} parent=1 // pred_check_branch
      %12 = sbr.rel (0) target = $region5
    $region4: #{tpu_custom_call.1} parent=1 // pred_region
      _
    $region5: #{tpu_custom_call.1} parent=1 // pred_fallthru
      _
    // Predicated region
    $region6: #{tpu_custom_call.1} parent=1 // pred_check
      _
    $region7: #{tpu_custom_call.1} parent=1 // pred_check_branch
      %14 = sbr.rel (0) target = $region9
    $region8: #{tpu_custom_call.1} parent=1 // pred_region
      %s16 = ssub.s32 256, 256
      %17 = vsyncadd [#allocation3], %s16
      %s18 = sshll.u32 [#allocation2], 4
      %s19 = int_to_ptr.vmem [resolvable:$true] %s18
      %24 = dma.hbm_to_vmem [thread:$0]  %s1, 256, %s19, [#allocation3], 64, 64, 4
    $region9: #{tpu_custom_call.1} parent=1 // pred_fallthru
      _
    // Predicated region
    $region10: #{tpu_custom_call.1} parent=1 // pred_check
      _
    $region11: #{tpu_custom_call.1} parent=1 // pred_check_branch
      %26 = sbr.rel (0) target = $region13
    $region12: #{tpu_custom_call.1} parent=1 // pred_region
      _
    $region13: #{tpu_custom_call.1} parent=1 // pred_fallthru
      _
    // Predicated region
    $region14: #{tpu_custom_call.1} parent=1 // pred_check
      _
    $region15: #{tpu_custom_call.1} parent=1 // pred_check_branch
      %28 = sbr.rel (0) target = $region17
    $region16: #{tpu_custom_call.1} parent=1 // pred_region
      _
    $region17: #{tpu_custom_call.1} parent=1 // pred_fallthru
      _
    // Predicated region
    $region18: #{tpu_custom_call.1} parent=1 // pred_check
      _
    $region19: #{tpu_custom_call.1} parent=1 // pred_check_branch
      %30 = sbr.rel (0) target = $region21
    $region20: #{tpu_custom_call.1} parent=1 // pred_region
      %31 = dma.done [#allocation3], 256
    $region21: #{tpu_custom_call.1} parent=1 // pred_fallthru
      _
    %v33 = vld [vmem:[%s0] sm:$0xff]
    %v34 = vpack.c.bf16 %v33, %v33
    %v35 = vld [vmem:[#allocation2] sm:$0xf]
    %v36 = vld [vmem:[#allocation2 + $0x4] sm:$0xf]
    %v37 = vld [vmem:[#allocation2 + $0x8] sm:$0xf]
    %v38 = vld [vmem:[#allocation2 + $0xc] sm:$0xf]
    %v43 = vunpack.c.l.b16 %v35
    %v44 = vunpack.c.l.b16 %v36
    %v45 = vunpack.c.l.b16 %v37
    %v46 = vunpack.c.l.b16 %v38
    %v47 = vpack.c.b16 %v44, %v43
    %v48 = vpack.c.b16 %v46, %v45
    %vm51 = vcmask 261120
    %v53 = vsel %vm51, %v34, 0
    %55 = vmatprep.subr.bf16.mxu0 0
    %56 = vmatpush1.bf16.msra.mxu0 %v47
    %57 = vmatprep.subr.bf16.mxu0 0
    %58 = vmatpush1.bf16.msra.mxu0 %v48
    %59 = vmatprep.subr.bf16.mxu0 0
    %60 = vmatpush1.bf16.msra.mxu0 0
    %61 = vmatprep.subr.bf16.mxu0 0
    %62 = vmatpush1.bf16.msra.mxu0 0
    %63 = vmatprep.subr.bf16.mxu0 0
    %64 = vmatpush1.bf16.msra.mxu0 0
    %65 = vmatprep.subr.bf16.mxu0 0
    %66 = vmatpush1.bf16.msra.mxu0 0
    %67 = vmatprep.subr.bf16.mxu0 0
    %68 = vmatpush1.bf16.msra.mxu0 0
    %69 = vmatprep.subr.bf16.mxu0 0
    %70 = vmatpush1.bf16.msra.mxu0 0
    %71 = vmatprep.subr.bf16.mxu0 0
    %72 = vmatpush1.bf16.msra.mxu0 0
    %73 = vmatprep.subr.bf16.mxu0 0
    %74 = vmatpush1.bf16.msra.mxu0 0
    %75 = vmatprep.subr.bf16.mxu0 0
    %76 = vmatpush1.bf16.msra.mxu0 0
    %77 = vmatprep.subr.bf16.mxu0 0
    %78 = vmatpush1.bf16.msra.mxu0 0
    %79 = vmatprep.subr.bf16.mxu0 0
    %80 = vmatpush1.bf16.msra.mxu0 0
    %81 = vmatprep.subr.bf16.mxu0 0
    %82 = vmatpush1.bf16.msra.mxu0 0
    %83 = vmatprep.subr.bf16.mxu0 0
    %84 = vmatpush1.bf16.msra.mxu0 0
    %85 = vmatprep.subr.bf16.mxu0 0
    %86 = vmatpush1.bf16.msra.mxu0 0
    %87 = vmatprep.mubr.bf16.mxu0 0
    %88 = vmatmul.mubr.bf16.gmra.mrb[0].mxu0 %v53
    %v89 = vpop.f32.mrb[0].mxu0
    %v90 = vadd.f32 0.0, %v89
    %v91 = vpop.f32.mrb[0].mxu0
    %v92 = vpop.f32.mrb[0].mxu0
    %v93 = vpop.f32.mrb[0].mxu0
    %94 = vdwg.mxu0
    %v95 = vmax.f32 %v90, 0.0
    %v96 = vpack.c.bf16 %v95, %v95
    %v97 = vld [vmem:[%s2] sm:$0xf]
    %v98 = vld [vmem:[%s2 + $0x4] sm:$0xf]
    %v99 = vld [vmem:[%s2 + $0x8] sm:$0xf]
    %v100 = vld [vmem:[%s2 + $0xc] sm:$0xf]
    %v101 = vld [vmem:[%s2 + $0x10] sm:$0xf]
    %v102 = vld [vmem:[%s2 + $0x14] sm:$0xf]
    %v103 = vld [vmem:[%s2 + $0x18] sm:$0xf]
    %v104 = vld [vmem:[%s2 + $0x1c] sm:$0xf]
    %v105 = vld [vmem:[%s2 + $0x20] sm:$0xf]
    %v106 = vld [vmem:[%s2 + $0x24] sm:$0xf]
    %v107 = vld [vmem:[%s2 + $0x28] sm:$0xf]
    %v108 = vld [vmem:[%s2 + $0x2c] sm:$0xf]
    %v109 = vld [vmem:[%s2 + $0x30] sm:$0xf]
    %v110 = vld [vmem:[%s2 + $0x34] sm:$0xf]
    %v111 = vld [vmem:[%s2 + $0x38] sm:$0xf]
    %v112 = vld [vmem:[%s2 + $0x3c] sm:$0xf]
    %v129 = vunpack.c.l.b16 %v97
    %v130 = vunpack.c.l.b16 %v98
    %v131 = vunpack.c.l.b16 %v99
    %v132 = vunpack.c.l.b16 %v100
    %v133 = vunpack.c.l.b16 %v101
    %v134 = vunpack.c.l.b16 %v102
    %v135 = vunpack.c.l.b16 %v103
    %v136 = vunpack.c.l.b16 %v104
    %v137 = vunpack.c.l.b16 %v105
    %v138 = vunpack.c.l.b16 %v106
    %v139 = vunpack.c.l.b16 %v107
    %v140 = vunpack.c.l.b16 %v108
    %v141 = vunpack.c.l.b16 %v109
    %v142 = vunpack.c.l.b16 %v110
    %v143 = vunpack.c.l.b16 %v111
    %v144 = vunpack.c.l.b16 %v112
    %v145 = vpack.c.b16 %v130, %v129
    %v146 = vpack.c.b16 %v132, %v131
    %v147 = vpack.c.b16 %v134, %v133
    %v148 = vpack.c.b16 %v136, %v135
    %v149 = vpack.c.b16 %v138, %v137
    %v150 = vpack.c.b16 %v140, %v139
    %v151 = vpack.c.b16 %v142, %v141
    %v152 = vpack.c.b16 %v144, %v143
    %161 = vmatprep.subr.bf16.mxu0 0
    %162 = vmatpush1.bf16.msra.mxu0 %v145
    %163 = vmatprep.subr.bf16.mxu0 0
    %164 = vmatpush1.bf16.msra.mxu0 %v146
    %165 = vmatprep.subr.bf16.mxu0 0
    %166 = vmatpush1.bf16.msra.mxu0 %v147
    %167 = vmatprep.subr.bf16.mxu0 0
    %168 = vmatpush1.bf16.msra.mxu0 %v148
    %169 = vmatprep.subr.bf16.mxu0 0
    %170 = vmatpush1.bf16.msra.mxu0 %v149
    %171 = vmatprep.subr.bf16.mxu0 0
    %172 = vmatpush1.bf16.msra.mxu0 %v150
    %173 = vmatprep.subr.bf16.mxu0 0
    %174 = vmatpush1.bf16.msra.mxu0 %v151
    %175 = vmatprep.subr.bf16.mxu0 0
    %176 = vmatpush1.bf16.msra.mxu0 %v152
    %177 = vmatprep.subr.bf16.mxu0 0
    %178 = vmatpush1.bf16.msra.mxu0 0
    %179 = vmatprep.subr.bf16.mxu0 0
    %180 = vmatpush1.bf16.msra.mxu0 0
    %181 = vmatprep.subr.bf16.mxu0 0
    %182 = vmatpush1.bf16.msra.mxu0 0
    %183 = vmatprep.subr.bf16.mxu0 0
    %184 = vmatpush1.bf16.msra.mxu0 0
    %185 = vmatprep.subr.bf16.mxu0 0
    %186 = vmatpush1.bf16.msra.mxu0 0
    %187 = vmatprep.subr.bf16.mxu0 0
    %188 = vmatpush1.bf16.msra.mxu0 0
    %189 = vmatprep.subr.bf16.mxu0 0
    %190 = vmatpush1.bf16.msra.mxu0 0
    %191 = vmatprep.subr.bf16.mxu0 0
    %192 = vmatpush1.bf16.msra.mxu0 0
    %193 = vmatprep.mubr.bf16.mxu0 0
    %194 = vmatmul.mubr.bf16.gmra.mrb[0].mxu0 %v96
    %v195 = vpop.f32.mrb[0].mxu0
    %v196 = vadd.f32 0.0, %v195
    %v197 = vpop.f32.mrb[0].mxu0
    %v198 = vpop.f32.mrb[0].mxu0
    %v199 = vpop.f32.mrb[0].mxu0
    %200 = vdwg.mxu0
    %v201 = vmax.f32 %v196, 0.0
    %v202 = vpack.c.bf16 %v201, %v201
    %v203 = vld [vmem:[%s3] sm:$0xf]
    %v204 = vld [vmem:[%s3 + $0x4] sm:$0xf]
    %v205 = vld [vmem:[%s3 + $0x8] sm:$0xf]
    %v206 = vld [vmem:[%s3 + $0xc] sm:$0xf]
    %v207 = vld [vmem:[%s3 + $0x10] sm:$0xf]
    %v208 = vld [vmem:[%s3 + $0x14] sm:$0xf]
    %v209 = vld [vmem:[%s3 + $0x18] sm:$0xf]
    %v210 = vld [vmem:[%s3 + $0x1c] sm:$0xf]
    %v211 = vld [vmem:[%s3 + $0x20] sm:$0xf]
    %v212 = vld [vmem:[%s3 + $0x24] sm:$0xf]
    %v213 = vld [vmem:[%s3 + $0x28] sm:$0xf]
    %v214 = vld [vmem:[%s3 + $0x2c] sm:$0xf]
    %v215 = vld [vmem:[%s3 + $0x30] sm:$0xf]
    %v216 = vld [vmem:[%s3 + $0x34] sm:$0xf]
    %v217 = vld [vmem:[%s3 + $0x38] sm:$0xf]
    %v218 = vld [vmem:[%s3 + $0x3c] sm:$0xf]
    %v235 = vunpack.c.l.b16 %v203
    %v236 = vunpack.c.l.b16 %v204
    %v237 = vunpack.c.l.b16 %v205
    %v238 = vunpack.c.l.b16 %v206
    %v239 = vunpack.c.l.b16 %v207
    %v240 = vunpack.c.l.b16 %v208
    %v241 = vunpack.c.l.b16 %v209
    %v242 = vunpack.c.l.b16 %v210
    %v243 = vunpack.c.l.b16 %v211
    %v244 = vunpack.c.l.b16 %v212
    %v245 = vunpack.c.l.b16 %v213
    %v246 = vunpack.c.l.b16 %v214
    %v247 = vunpack.c.l.b16 %v215
    %v248 = vunpack.c.l.b16 %v216
    %v249 = vunpack.c.l.b16 %v217
    %v250 = vunpack.c.l.b16 %v218
    %v251 = vpack.c.b16 %v236, %v235
    %v252 = vpack.c.b16 %v238, %v237
    %v253 = vpack.c.b16 %v240, %v239
    %v254 = vpack.c.b16 %v242, %v241
    %v255 = vpack.c.b16 %v244, %v243
    %v256 = vpack.c.b16 %v246, %v245
    %v257 = vpack.c.b16 %v248, %v247
    %v258 = vpack.c.b16 %v250, %v249
    %267 = vmatprep.subr.bf16.mxu0 0
    %268 = vmatpush1.bf16.msra.mxu0 %v251
    %269 = vmatprep.subr.bf16.mxu0 0
    %270 = vmatpush1.bf16.msra.mxu0 %v252
    %271 = vmatprep.subr.bf16.mxu0 0
    %272 = vmatpush1.bf16.msra.mxu0 %v253
    %273 = vmatprep.subr.bf16.mxu0 0
    %274 = vmatpush1.bf16.msra.mxu0 %v254
    %275 = vmatprep.subr.bf16.mxu0 0
    %276 = vmatpush1.bf16.msra.mxu0 %v255
    %277 = vmatprep.subr.bf16.mxu0 0
    %278 = vmatpush1.bf16.msra.mxu0 %v256
    %279 = vmatprep.subr.bf16.mxu0 0
    %280 = vmatpush1.bf16.msra.mxu0 %v257
    %281 = vmatprep.subr.bf16.mxu0 0
    %282 = vmatpush1.bf16.msra.mxu0 %v258
    %283 = vmatprep.subr.bf16.mxu0 0
    %284 = vmatpush1.bf16.msra.mxu0 0
    %285 = vmatprep.subr.bf16.mxu0 0
    %286 = vmatpush1.bf16.msra.mxu0 0
    %287 = vmatprep.subr.bf16.mxu0 0
    %288 = vmatpush1.bf16.msra.mxu0 0
    %289 = vmatprep.subr.bf16.mxu0 0
    %290 = vmatpush1.bf16.msra.mxu0 0
    %291 = vmatprep.subr.bf16.mxu0 0
    %292 = vmatpush1.bf16.msra.mxu0 0
    %293 = vmatprep.subr.bf16.mxu0 0
    %294 = vmatpush1.bf16.msra.mxu0 0
    %295 = vmatprep.subr.bf16.mxu0 0
    %296 = vmatpush1.bf16.msra.mxu0 0
    %297 = vmatprep.subr.bf16.mxu0 0
    %298 = vmatpush1.bf16.msra.mxu0 0
    %299 = vmatprep.mubr.bf16.mxu0 0
    %300 = vmatmul.mubr.bf16.gmra.mrb[0].mxu0 %v202
    %v301 = vpop.f32.mrb[0].mxu0
    %v302 = vadd.f32 0.0, %v301
    %v303 = vpop.f32.mrb[0].mxu0
    %v304 = vpop.f32.mrb[0].mxu0
    %v305 = vpop.f32.mrb[0].mxu0
    %306 = vdwg.mxu0
    %vm307 = vcmask 130048
    %308 = vst.msk [vmem:[#allocation5] sm:$0xff] %vm307, %v302
    // Predicated region
    $region22: #{tpu_custom_call.1} parent=1 // pred_check
      _
    $region23: #{tpu_custom_call.1} parent=1 // pred_check_branch
      %310 = sbr.rel (0) target = $region25
    $region24: #{tpu_custom_call.1} parent=1 // pred_region
      %s312 = ssub.s32 128, 128
      %313 = vsyncadd [#allocation4], %s312
      %s315 = sshll.u32 [#allocation5], 4
      %s316 = int_to_ptr.vmem [resolvable:$true] %s315
      %318 = dma.vmem_to_hbm [thread:$0]  %s316, 128, %s4, [#allocation4]
    $region25: #{tpu_custom_call.1} parent=1 // pred_fallthru
      _
    // Predicated region
    $region26: #{tpu_custom_call.1} parent=1 // pred_check
      _
    $region27: #{tpu_custom_call.1} parent=1 // pred_check_branch
      %320 = sbr.rel (0) target = $region29
    $region28: #{tpu_custom_call.1} parent=1 // pred_region
      %321 = dma.done [#allocation4], 128
    $region29: #{tpu_custom_call.1} parent=1 // pred_fallthru
      _
    %322 = vsyncpa [#allocation3], 1
    %323 = vsyncpa [#allocation4], 1

</llo_original>
